<compile_context>
chip_gen: v7x
topology: tpu7x:2x2x1
jax: 0.10.0
libtpu: 0.0.40
codegen_flags: <defaults>
</compile_context>

<pallas_src>
import jax
import jax.numpy as jnp
from jax.experimental import pallas as pl
from jax.experimental.pallas import tpu as pltpu


def _round_up(x, m):
    return (x + m - 1) // m * m


def _conv_sigmoid_gate(s, w_ref, b_ref):
    """k=3 zero-padded conv over the channel (lane) axis + sigmoid.

    s: (1, C) float32 channel sums. w_ref holds conv_weight / N (the 1/N of
    the global average pool is folded into the weights); b_ref holds the bias.
    """
    c = s.shape[-1]
    idx = jax.lax.broadcasted_iota(jnp.int32, (1, c), 1)
    # positive axis index (pltpu.roll rejects negative axes)
    left = jnp.where(idx == 0, 0.0, pltpu.roll(s, shift=1, axis=1))            # s[i-1]
    right = jnp.where(idx == c - 1, 0.0, pltpu.roll(s, shift=c - 1, axis=1))   # s[i+1]
    y = w_ref[0] * left + w_ref[1] * s + w_ref[2] * right + b_ref[0]
    return jax.nn.sigmoid(y)


def _eca_fused_kernel(w_ref, b_ref, x_ref, o_ref):
    # x_ref / o_ref: (Np, Cp) -- one (padded) batch element. Single pass:
    # sum -> gate -> scale, so x is read once and written once.
    x = x_ref[...]
    s = jnp.sum(x.astype(jnp.float32), axis=0, keepdims=True)      # (1, Cp)
    gate = _conv_sigmoid_gate(s, w_ref, b_ref)                     # (1, Cp)
    o_ref[...] = (x.astype(jnp.float32) * gate).astype(o_ref.dtype)


def _eca_reduce_kernel(w_ref, b_ref, x_ref, gate_ref):
    # x_ref: (TN, Cp) token tile; gate_ref: (1, Cp) f32 output block, resident
    # across the token-tile (reduction) axis for the current batch element.
    t = pl.program_id(1)

    @pl.when(t == 0)
    def _():
        gate_ref[...] = jnp.zeros_like(gate_ref)

    gate_ref[...] += jnp.sum(x_ref[...].astype(jnp.float32), axis=0, keepdims=True)

    @pl.when(t == pl.num_programs(1) - 1)
    def _():
        # Gate (conv + sigmoid) computed exactly once per batch element.
        gate_ref[...] = _conv_sigmoid_gate(gate_ref[...], w_ref, b_ref)


def _eca_apply_kernel(gate_ref, x_ref, o_ref):
    # Pure load-mul-store: gate_ref (1, Cp) broadcasts over x_ref (TN, Cp).
    o_ref[...] = (x_ref[...] * gate_ref[...]).astype(o_ref.dtype)


def eca_attention(x, conv_weight, conv_bias, H, W, use_cls_token=False,
                  force_tiled=False):
    """x: (B, N(+1 if cls), C). conv_weight: (3,) (or (1,1,3)), conv_bias: (1,)."""
    if use_cls_token:
        cls_feat = x[:, :1, :]
        x = x[:, 1:, :]

    B, N, C = x.shape
    assert N == H * W, "token count must equal H*W"

    # Fold the 1/N of the global average pool into the conv weights so the
    # kernels accumulate plain sums (exact even when the reduction is tiled).
    w = conv_weight.reshape(-1).astype(jnp.float32) / jnp.float32(N)
    b = conv_bias.reshape(-1).astype(jnp.float32)

    # Pad to sublane/lane-dense tiles: unmasked, lane-dense stores everywhere.
    itemsize = jnp.dtype(x.dtype).itemsize
    sub = 16 if itemsize == 2 else 8
    Cp = _round_up(C, 128)

    block_bytes = _round_up(N, sub) * Cp * itemsize
    use_fused = (not force_tiled) and block_bytes <= 4 * 1024 * 1024

    if use_fused:
        Np = _round_up(N, sub)
        tn = Np
    else:
        # ~1 MiB x tiles: big enough to amortize per-step overhead (~0.35 us),
        # small enough for v7x's 32 MiB scoped VMEM with double buffering.
        tn = max(sub, min(1024, ((1 << 20) // (Cp * itemsize)) // sub * sub))
        tn = min(tn, _round_up(N, sub))
        Np = _round_up(N, tn)

    xp = x
    if (Np, Cp) != (N, C):
        xp = jnp.pad(x, ((0, 0), (0, Np - N), (0, Cp - C)))

    if use_fused:
        out_p = pl.pallas_call(
            _eca_fused_kernel,
            out_shape=jax.ShapeDtypeStruct((B, Np, Cp), x.dtype),
            grid=(B,),
            in_specs=[
                pl.BlockSpec(memory_space=pltpu.MemorySpace.SMEM),
                pl.BlockSpec(memory_space=pltpu.MemorySpace.SMEM),
                pl.BlockSpec((pl.Squeezed(), Np, Cp), lambda bi: (bi, 0, 0)),
            ],
            out_specs=pl.BlockSpec((pl.Squeezed(), Np, Cp), lambda bi: (bi, 0, 0)),
            compiler_params=pltpu.CompilerParams(
                dimension_semantics=("parallel",),
                vmem_limit_bytes=int(max(32 * 1024 * 1024, 6 * block_bytes)),
            ),
        )(w, b, xp)
    else:
        nt = Np // tn
        # Phase 1: channel-sum reduction + gate, once per batch element.
        gate = pl.pallas_call(
            _eca_reduce_kernel,
            out_shape=jax.ShapeDtypeStruct((B, 1, Cp), jnp.float32),
            grid=(B, nt),
            in_specs=[
                pl.BlockSpec(memory_space=pltpu.MemorySpace.SMEM),
                pl.BlockSpec(memory_space=pltpu.MemorySpace.SMEM),
                pl.BlockSpec((pl.Squeezed(), tn, Cp), lambda bi, ti: (bi, ti, 0)),
            ],
            out_specs=pl.BlockSpec((pl.Squeezed(), 1, Cp), lambda bi, ti: (bi, 0, 0)),
            compiler_params=pltpu.CompilerParams(
                dimension_semantics=("parallel", "arbitrary"),
                vmem_limit_bytes=32 * 1024 * 1024,
            ),
        )(w, b, xp)
        # Phase 2: pure load-mul-store; both axes parallel (v7x megacore).
        out_p = pl.pallas_call(
            _eca_apply_kernel,
            out_shape=jax.ShapeDtypeStruct((B, Np, Cp), x.dtype),
            grid=(B, nt),
            in_specs=[
                pl.BlockSpec((pl.Squeezed(), 1, Cp), lambda bi, ti: (bi, 0, 0)),
                pl.BlockSpec((pl.Squeezed(), tn, Cp), lambda bi, ti: (bi, ti, 0)),
            ],
            out_specs=pl.BlockSpec((pl.Squeezed(), tn, Cp), lambda bi, ti: (bi, ti, 0)),
            compiler_params=pltpu.CompilerParams(
                dimension_semantics=("parallel", "parallel"),
                vmem_limit_bytes=32 * 1024 * 1024,
            ),
        )(gate, xp)

    out = out_p[:, :N, :C] if (Np, Cp) != (N, C) else out_p

    if use_cls_token:
        out = jnp.concatenate([cls_feat, out], axis=1)
    return out


def _reference(x, conv_weight, conv_bias):
    # Pure-JAX reference mirroring the PyTorch forward (no cls token).
    B, N, C = x.shape
    wf = conv_weight.reshape(-1).astype(jnp.float32)
    bf = conv_bias.reshape(-1).astype(jnp.float32)
    m = jnp.mean(x.astype(jnp.float32), axis=1)                   # (B, C)
    mp = jnp.pad(m, ((0, 0), (1, 1)))                             # zero pad along C
    y = wf[0] * mp[:, 0:C] + wf[1] * mp[:, 1:C + 1] + wf[2] * mp[:, 2:C + 2] + bf[0]
    gate = jax.nn.sigmoid(y)                                      # (B, C)
    return (x.astype(jnp.float32) * gate[:, None, :]).astype(x.dtype)


if __name__ == "__main__":
    key = jax.random.PRNGKey(0)
    kx, kw, kb, kc, ks = jax.random.split(key, 5)

    B, H, W, C = 2, 8, 8, 128
    N = H * W
    x = jax.random.normal(kx, (B, N, C), dtype=jnp.float32)
    conv_weight = jax.random.normal(kw, (3,), dtype=jnp.float32) * 0.5
    conv_bias = jax.random.normal(kb, (1,), dtype=jnp.float32) * 0.1

    ref = _reference(x, conv_weight, conv_bias)

    # Fused (single-pass, per-batch block) path.
    out_fused = jax.block_until_ready(
        eca_attention(x, conv_weight, conv_bias, H, W, use_cls_token=False))
    assert out_fused.shape == (B, N, C)
    assert jnp.allclose(out_fused, ref, atol=1e-5, rtol=1e-5), "fused mismatch"

    # Tiled (two-phase reduce/apply) path.
    out_tiled = jax.block_until_ready(
        eca_attention(x, conv_weight, conv_bias, H, W, use_cls_token=False,
                      force_tiled=True))
    assert jnp.allclose(out_tiled, ref, atol=1e-5, rtol=1e-5), "tiled mismatch"

    # cls-token variant.
    x_cls = jax.random.normal(kc, (B, N + 1, C), dtype=jnp.float32)
    out_cls = jax.block_until_ready(
        eca_attention(x_cls, conv_weight, conv_bias, H, W, use_cls_token=True))
    ref_cls = jnp.concatenate(
        [x_cls[:, :1, :], _reference(x_cls[:, 1:, :], conv_weight, conv_bias)], axis=1)
    assert jnp.allclose(out_cls, ref_cls, atol=1e-5, rtol=1e-5), "cls mismatch"

    # Ragged channel count exercises the pad-to-128 / slice-back path.
    x_small = jax.random.normal(ks, (1, 16, 96), dtype=jnp.float32)
    out_small = jax.block_until_ready(
        eca_attention(x_small, conv_weight, conv_bias, 4, 4, use_cls_token=False))
    ref_small = _reference(x_small, conv_weight, conv_bias)
    assert jnp.allclose(out_small, ref_small, atol=1e-5, rtol=1e-5), "pad mismatch"

    print("KERNEL_OK")
</pallas_src>

<mosaic_0001>
module attributes {stable_mosaic.version = 11 : i64} {
  func.func @_eca_fused_kernel(%arg0: i32, %arg1: memref<3xf32, #tpu.memory_space<smem>>, %arg2: memref<1xf32, #tpu.memory_space<smem>>, %arg3: memref<1x64x128xf32, #tpu.memory_space<vmem>>, %arg4: memref<1x64x128xf32, #tpu.memory_space<vmem>>) attributes {dimension_semantics = [#tpu.dimension_semantics<parallel>], iteration_bounds = array<i64: 2>, scalar_prefetch = 0 : i64, scratch_operands = 0 : i64, tpu.core_type = #tpu.core_type<tc>, window_params = [{transform_indices = @transform_0, window_bounds = array<i64: 3>}, {transform_indices = @transform_1, window_bounds = array<i64: 1>}, {transform_indices = @transform_2, window_bounds = array<i64: 1, 64, 128>}, {transform_indices = @transform_3, window_bounds = array<i64: 1, 64, 128>}]} {
    %c0 = arith.constant 0 : index
    %c0_0 = arith.constant 0 : index
    %c0_1 = arith.constant 0 : index
    %0 = vector.load %arg3[%c0, %c0_0, %c0_1] : memref<1x64x128xf32, #tpu.memory_space<vmem>>, vector<1x64x128xf32>
    %1 = vector.shape_cast %0 : vector<1x64x128xf32> to vector<64x128xf32>
    %cst = arith.constant dense<0.000000e+00> : vector<128xf32>
    %2 = vector.multi_reduction <add>, %1, %cst [0] : vector<64x128xf32> to vector<128xf32>
    %3 = vector.shape_cast %2 : vector<128xf32> to vector<1x128xf32>
    %4 = tpu.iota {dimensions = array<i32: 1>} : vector<1x128xi32>
    %c0_i32 = arith.constant 0 : i32
    %5 = vector.broadcast %c0_i32 : i32 to vector<1x128xi32>
    %6 = arith.cmpi eq, %4, %5 : vector<1x128xi32>
    %c1_i32 = arith.constant 1 : i32
    %7 = tpu.dynamic_rotate %3 by %c1_i32 dim 1 : vector<1x128xf32>, i32 -> vector<1x128xf32>
    %cst_2 = arith.constant 0.000000e+00 : f32
    %8 = vector.broadcast %cst_2 : f32 to vector<1x128xf32>
    %9 = arith.select %6, %8, %7 : vector<1x128xi1>, vector<1x128xf32>
    %c127_i32 = arith.constant 127 : i32
    %10 = vector.broadcast %c127_i32 : i32 to vector<1x128xi32>
    %11 = arith.cmpi eq, %4, %10 : vector<1x128xi32>
    %c127_i32_3 = arith.constant 127 : i32
    %12 = tpu.dynamic_rotate %3 by %c127_i32_3 dim 1 : vector<1x128xf32>, i32 -> vector<1x128xf32>
    %cst_4 = arith.constant 0.000000e+00 : f32
    %13 = vector.broadcast %cst_4 : f32 to vector<1x128xf32>
    %14 = arith.select %11, %13, %12 : vector<1x128xi1>, vector<1x128xf32>
    %c0_5 = arith.constant 0 : index
    %15 = memref.load %arg1[%c0_5] : memref<3xf32, #tpu.memory_space<smem>>
    %16 = vector.broadcast %15 : f32 to vector<1x128xf32>
    %17 = arith.mulf %16, %9 : vector<1x128xf32>
    %c1 = arith.constant 1 : index
    %18 = memref.load %arg1[%c1] : memref<3xf32, #tpu.memory_space<smem>>
    %19 = vector.broadcast %18 : f32 to vector<1x128xf32>
    %20 = arith.mulf %19, %3 : vector<1x128xf32>
    %21 = arith.addf %17, %20 : vector<1x128xf32>
    %c2 = arith.constant 2 : index
    %22 = memref.load %arg1[%c2] : memref<3xf32, #tpu.memory_space<smem>>
    %23 = vector.broadcast %22 : f32 to vector<1x128xf32>
    %24 = arith.mulf %23, %14 : vector<1x128xf32>
    %25 = arith.addf %21, %24 : vector<1x128xf32>
    %c0_6 = arith.constant 0 : index
    %26 = memref.load %arg2[%c0_6] : memref<1xf32, #tpu.memory_space<smem>>
    %27 = vector.broadcast %26 : f32 to vector<1x128xf32>
    %28 = arith.addf %25, %27 : vector<1x128xf32>
    %29 = arith.negf %28 : vector<1x128xf32>
    %30 = math.exp %29 : vector<1x128xf32>
    %cst_7 = arith.constant 1.000000e+00 : f32
    %31 = vector.broadcast %cst_7 : f32 to vector<1x128xf32>
    %32 = arith.addf %31, %30 : vector<1x128xf32>
    %33 = arith.divf %31, %32 : vector<1x128xf32>
    %34 = vector.broadcast %33 : vector<1x128xf32> to vector<64x128xf32>
    %35 = arith.mulf %1, %34 : vector<64x128xf32>
    %c0_8 = arith.constant 0 : index
    %c0_9 = arith.constant 0 : index
    %c0_10 = arith.constant 0 : index
    %36 = vector.load %arg4[%c0_8, %c0_9, %c0_10] : memref<1x64x128xf32, #tpu.memory_space<vmem>>, vector<1x64x128xf32>
    %37 = vector.shape_cast %36 : vector<1x64x128xf32> to vector<64x128xf32>
    %38 = vector.shape_cast %35 : vector<64x128xf32> to vector<1x64x128xf32>
    tpu.vector_store %arg4[%c0_8, %c0_9, %c0_10], %38 {strides = array<i32>} : memref<1x64x128xf32, #tpu.memory_space<vmem>>, vector<1x64x128xf32>,
    return
  }
  func.func @transform_0(%arg0: i32) -> i32 {
    %c0_i32 = arith.constant 0 : i32
    %c0_i32_0 = arith.constant 0 : i32
    return %c0_i32 : i32
  }
  func.func @transform_1(%arg0: i32) -> i32 {
    %c0_i32 = arith.constant 0 : i32
    %c0_i32_0 = arith.constant 0 : i32
    return %c0_i32 : i32
  }
  func.func @transform_2(%arg0: i32) -> (i32, i32, i32) {
    %c0_i32 = arith.constant 0 : i32
    %c0_i32_0 = arith.constant 0 : i32
    %c0_i32_1 = arith.constant 0 : i32
    return %arg0, %c0_i32, %c0_i32_0 : i32, i32, i32
  }
  func.func @transform_3(%arg0: i32) -> (i32, i32, i32) {
    %c0_i32 = arith.constant 0 : i32
    %c0_i32_0 = arith.constant 0 : i32
    %c0_i32_1 = arith.constant 0 : i32
    return %arg0, %c0_i32, %c0_i32_0 : i32, i32, i32
  }
}

</mosaic_0001>

<llo_original>
// kernel: tpu_custom_call.1
$region0: #{tpu_custom_call.1}
  #allocation0 [shape = 'u32[]', space=smem, size = 0x4, offset = 0x4, fixed_abs, tag = 'smem constant byte address 0x4 - core index']
  #allocation1 [shape = 'u32[144,128]{1,0:T(1,128)}', space=vmem, size = 0x12000, scoped, tag = 'internal scratch']
  #allocation2 [shape = 'f32[1]{0:T(128)S(6)}', space=smem, size = 0x200, scoped, tag = 'scoped memory for tpu_custom_call.1']
  %s0 = inlined_call_operand.vmem [shape: f32[3], index: 0, kind: input, shape index: {}]
  %s1 = inlined_call_operand.<no memory space> [shape: f32[1], index: 1, kind: input, shape index: {}]
  %s2 = inlined_call_operand.hbm [shape: f32[2,64,128], index: 2, kind: input, shape index: {}]
  %s3 = inlined_call_operand.hbm [shape: f32[2,64,128], index: 3, kind: output, shape index: {}]
  %s4 = sld [smem:[#allocation0]]
  $region53: #{tpu_custom_call.1} parent=0
    _
  %s6 = ssub.s32 1, %s4
  %s7 = scalar_select 0, %s6, %s4
  %8 = sst [smem:[#allocation2]] %s1
  $region1: #{tpu_custom_call.1} parent=0
    #allocation3 [shape = 'u8[512]{0}', space=smem, size = 0x200, scoped, tag = 'input window, operand 0, single buffered']
    #allocation4 [shape = 's32[2]{0}', space=sflag, size = 0x8, scoped, tag = 'scoped memory for tpu_custom_call.1']
    #allocation5 [shape = 's32[2]{0}', space=sflag, size = 0x8, scoped, tag = 'scoped memory for tpu_custom_call.1']
    #allocation6 [shape = 's32[2]{0}', space=sflag, size = 0x8, scoped, tag = 'scoped memory for tpu_custom_call.1']
    #allocation7 [shape = 'u8[65536]{0}', space=vmem, size = 0x10000, scoped, tag = 'input window, operand 2']
    #allocation8 [shape = 'u8[65536]{0}', space=vmem, size = 0x10000, scoped, tag = 'output window, operand 0']
    %9 = vsyncpa [#allocation6], 0
    %10 = vsyncpa [#allocation4], 0
    %s11 = scalar_lea.sflag [#allocation4], 1
    %12 = vsyncpa %s11, 0
    %13 = vsyncpa [#allocation5], 0
    %s14 = scalar_lea.sflag [#allocation5], 1
    %15 = vsyncpa %s14, 0
    loop: start=0, step=1, limit=4
    $region2: #{tpu_custom_call.1} parent=1 // loop_pre_header
      _
    $region3: #{tpu_custom_call.1} parent=1 // loop_header
      %s17 = sphi 0, %s21
      %p18 = scmp.ge.s32.totalorder %s17, 4
      %s25 = sphi 0, %s25
      %s27 = sphi 0, %s25
      %s28 = sphi 0, %s27
      %s42 = sphi 0, %s28
      %s46 = sphi 0, %s46
      %s48 = sphi 0, %s46
      %s49 = sphi 0, %s48
      %s63 = sphi 0, %s49
      %s69 = sphi 0, %s71
      %s72 = sphi 0, %s69
      %s73 = sphi 0, %s72
      %s89 = sphi 0, %s73
      %s95 = sphi 0, %s97
      %s98 = sphi 0, %s95
      %s99 = sphi 0, %s98
      %s115 = sphi 0, %s99
    $region4: #{tpu_custom_call.1} parent=1 // loop_header_branch
      %20 = sbr.rel (%p18) target = $region8
    $region5: #{tpu_custom_call.1} parent=1 // loop_body
      %s22 = ssub.s32 %s17, 1
      %s23 = ssub.s32 %s17, 2
      %s24 = sadd.s32 %s17, 1
      %s26 = sadd.s32 %s25, 1
      %p29 = scmp.eq.s32.totalorder %s17, 1
      %p30 = scmp.ne.s32.totalorder %s25, %s27
      %p31 = scmp.eq.s32.totalorder %s17, 0
      %p32 = por %p30, %p31
      %p33 = scmp.ne.s32.totalorder %s25, %s27
      %p34 = scmp.eq.s32.totalorder %s22, 1
      %p35 = por %p33, %p34
      %p36 = scmp.ne.s32.totalorder %s27, %s28
      %p37 = scmp.eq.s32.totalorder %s22, 0
      %p38 = por %p36, %p37
      %p39 = scmp.ne.s32.totalorder %s27, %s28
      %p40 = scmp.eq.s32.totalorder %s23, 1
      %p41 = por %p39, %p40
      %p43 = scmp.ne.s32.totalorder %s28, %s42
      %p44 = scmp.eq.s32.totalorder %s23, 0
      %p45 = por %p43, %p44
      %s47 = sadd.s32 %s46, 1
      %p50 = scmp.eq.s32.totalorder %s17, 1
      %p51 = scmp.ne.s32.totalorder %s46, %s48
      %p52 = scmp.eq.s32.totalorder %s17, 0
      %p53 = por %p51, %p52
      %p54 = scmp.ne.s32.totalorder %s46, %s48
      %p55 = scmp.eq.s32.totalorder %s22, 1
      %p56 = por %p54, %p55
      %p57 = scmp.ne.s32.totalorder %s48, %s49
      %p58 = scmp.eq.s32.totalorder %s22, 0
      %p59 = por %p57, %p58
      %p60 = scmp.ne.s32.totalorder %s48, %s49
      %p61 = scmp.eq.s32.totalorder %s23, 1
      %p62 = por %p60, %p61
      %p64 = scmp.ne.s32.totalorder %s49, %s63
      %p65 = scmp.eq.s32.totalorder %s23, 0
      %p66 = por %p64, %p65
      %s67 = ssub.s32 %s17, %s24
      %p68 = scmp.eq.s32.totalorder %s67, 0
      %s70 = sadd.s32 %s69, 1
      %s71 = scalar_select %p68, %s69, %s70
      %p74 = pneg %p68
      %p75 = scmp.eq.s32.totalorder %s17, 1
      %p76 = por %p74, %p75
      %p77 = scmp.ne.s32.totalorder %s69, %s72
      %p78 = scmp.eq.s32.totalorder %s17, 0
      %p79 = por %p77, %p78
      %p80 = scmp.ne.s32.totalorder %s69, %s72
      %p81 = scmp.eq.s32.totalorder %s22, 1
      %p82 = por %p80, %p81
      %p83 = scmp.ne.s32.totalorder %s72, %s73
      %p84 = scmp.eq.s32.totalorder %s22, 0
      %p85 = por %p83, %p84
      %p86 = scmp.ne.s32.totalorder %s72, %s73
      %p87 = scmp.eq.s32.totalorder %s23, 1
      %p88 = por %p86, %p87
      %p90 = scmp.ne.s32.totalorder %s73, %s89
      %p91 = scmp.eq.s32.totalorder %s23, 0
      %p92 = por %p90, %p91
      %s93 = ssub.s32 %s17, %s24
      %p94 = scmp.eq.s32.totalorder %s93, 0
      %s96 = sadd.s32 %s95, 1
      %s97 = scalar_select %p94, %s95, %s96
      %p100 = pneg %p94
      %p101 = scmp.eq.s32.totalorder %s17, 1
      %p102 = por %p100, %p101
      %p103 = scmp.ne.s32.totalorder %s95, %s98
      %p104 = scmp.eq.s32.totalorder %s17, 0
      %p105 = por %p103, %p104
      %p106 = scmp.ne.s32.totalorder %s95, %s98
      %p107 = scmp.eq.s32.totalorder %s22, 1
      %p108 = por %p106, %p107
      %p109 = scmp.ne.s32.totalorder %s98, %s99
      %p110 = scmp.eq.s32.totalorder %s22, 0
      %p111 = por %p109, %p110
      %p112 = scmp.ne.s32.totalorder %s98, %s99
      %p113 = scmp.eq.s32.totalorder %s23, 1
      %p114 = por %p112, %p113
      %p116 = scmp.ne.s32.totalorder %s99, %s115
      %p117 = scmp.eq.s32.totalorder %s23, 0
      %p118 = por %p116, %p117
      %p119 = scmp.le.s32.totalorder 1, %s17
      %p120 = scmp.lt.s32.totalorder %s17, 3
      %p121 = pnand %p119, %p120
      %p122 = pneg %p121
      // Predicated region
      $region9: #{tpu_custom_call.1} parent=5 // pred_check
        _
      $region10: #{tpu_custom_call.1} parent=5 // pred_check_branch
        %124 = sbr.rel (%p121) target = $region12
      $region11: #{tpu_custom_call.1} parent=5 // pred_region
        %s125 = ssub.s32 %s17, 1
        // Predicated region
        $region13: #{tpu_custom_call.1} parent=11 // pred_check
          %p126 = pneg %p38
        $region14: #{tpu_custom_call.1} parent=11 // pred_check_branch
          %128 = sbr.rel (%p126) target = $region16
        $region15: #{tpu_custom_call.1} parent=11 // pred_region
          %s130 = ssub.s32 16, 16
          %131 = vsyncadd [#allocation6], %s130
          %s133 = sshll.u32 %s0, 4
          %s134 = int_to_ptr.vmem [resolvable:$true] %s133
          %136 = dma.vmem_to_smem %s134, 16, [#allocation3], [#allocation6]
        $region16: #{tpu_custom_call.1} parent=11 // pred_fallthru
          _
        // Predicated region
        $region17: #{tpu_custom_call.1} parent=11 // pred_check
          %p137 = pneg %p59
        $region18: #{tpu_custom_call.1} parent=11 // pred_check_branch
          %139 = sbr.rel (%p137) target = $region20
        $region19: #{tpu_custom_call.1} parent=11 // pred_region
          _
        $region20: #{tpu_custom_call.1} parent=11 // pred_fallthru
          _
      $region12: #{tpu_custom_call.1} parent=5 // pred_fallthru
        _
      %p140 = scmp.lt.s32.totalorder %s17, 2
      // Predicated region
      $region21: #{tpu_custom_call.1} parent=5 // pred_check
        %p141 = pneg %p140
      $region22: #{tpu_custom_call.1} parent=5 // pred_check_branch
        %143 = sbr.rel (%p141) target = $region24
      $region23: #{tpu_custom_call.1} parent=5 // pred_region
        // Predicated region
        $region25: #{tpu_custom_call.1} parent=23 // pred_check
          %p144 = pneg %p79
        $region26: #{tpu_custom_call.1} parent=23 // pred_check_branch
          %146 = sbr.rel (%p144) target = $region28
        $region27: #{tpu_custom_call.1} parent=23 // pred_region
          %s147 = sand.u32 %s69, 1
          %s148 = scalar_lea.sflag [#allocation4], %s147
          %s149 = sand.u32 %s69, 1
          %s150 = smul.addr %s149, 64
          %s151 = scalar_lea.vmem [#allocation7], %s150
          %s153 = ssub.s32 1024, 1024
          %154 = vsyncadd %s148, %s153
          %s155 = smul.addr %s17, 8
          %s156 = smul.addr %s155, 128
          %s157 = scalar_lea.hbm %s2, %s156
          %s158 = sshll.u32 %s151, 4
          %s159 = int_to_ptr.vmem [resolvable:$true] %s158
          %164 = dma.hbm_to_vmem [thread:$0]  %s157, 1024, %s159, %s148, 128, 128, 8
        $region28: #{tpu_custom_call.1} parent=23 // pred_fallthru
          _
      $region24: #{tpu_custom_call.1} parent=5 // pred_fallthru
        _
      %p165 = scmp.le.s32.totalorder 1, %s17
      %p166 = scmp.lt.s32.totalorder %s17, 3
      %p167 = pnand %p165, %p166
      %p168 = pneg %p167
      // Predicated region
      $region29: #{tpu_custom_call.1} parent=5 // pred_check
        _
      $region30: #{tpu_custom_call.1} parent=5 // pred_check_branch
        %170 = sbr.rel (%p167) target = $region32
      $region31: #{tpu_custom_call.1} parent=5 // pred_region
        %s171 = ssub.s32 %s17, 1
        // Predicated region
        $region33: #{tpu_custom_call.1} parent=31 // pred_check
          %p172 = pneg %p38
        $region34: #{tpu_custom_call.1} parent=31 // pred_check_branch
          %174 = sbr.rel (%p172) target = $region36
        $region35: #{tpu_custom_call.1} parent=31 // pred_region
          %175 = dma.done [#allocation6], 16
        $region36: #{tpu_custom_call.1} parent=31 // pred_fallthru
          _
        %s176 = sand.u32 %s72, 1
        %s177 = scalar_lea.sflag [#allocation4], %s176
        %s178 = sand.u32 %s72, 1
        %s179 = smul.addr %s178, 64
        %s180 = scalar_lea.vmem [#allocation7], %s179
        // Predicated region
        $region37: #{tpu_custom_call.1} parent=31 // pred_check
          %p181 = pneg %p85
        $region38: #{tpu_custom_call.1} parent=31 // pred_check_branch
          %183 = sbr.rel (%p181) target = $region40
        $region39: #{tpu_custom_call.1} parent=31 // pred_region
          %184 = dma.done %s177, 1024
        $region40: #{tpu_custom_call.1} parent=31 // pred_fallthru
          _
        %185 = sfence
        %p186 = pneg %p38
        %p187 = pneg %p35
        %p188 = pneg %p59
        %p189 = pneg %p56
        %s190 = sand.u32 %s72, 1
        %s191 = scalar_lea.sflag [#allocation4], %s190
        %s192 = sand.u32 %s72, 1
        %s193 = smul.addr %s192, 64
        %s194 = scalar_lea.vmem [#allocation7], %s193
        %p195 = pneg %p85
        %p196 = pneg %p82
        %p197 = pneg %p111
        %p198 = pneg %p108
        %s199 = sand.u32 %s98, 1
        %s200 = scalar_lea.sflag [#allocation5], %s199
        %s201 = sand.u32 %s98, 1
        %s202 = smul.addr %s201, 64
        %s203 = scalar_lea.vmem [#allocation8], %s202
        %v204 = vld [vmem:[%s180] sm:$0xff]
        %v205 = vld [vmem:[%s180 + $0x8] sm:$0xff]
        %v206 = vld [vmem:[%s180 + $0x10] sm:$0xff]
        %v207 = vld [vmem:[%s180 + $0x18] sm:$0xff]
        %v208 = vld [vmem:[%s180 + $0x20] sm:$0xff]
        %v209 = vld [vmem:[%s180 + $0x28] sm:$0xff]
        %v210 = vld [vmem:[%s180 + $0x30] sm:$0xff]
        %v211 = vld [vmem:[%s180 + $0x38] sm:$0xff]
        %v212 = vadd.f32 %v204, %v205
        %v213 = vadd.f32 %v212, %v206
        %v214 = vadd.f32 %v213, %v207
        %v215 = vadd.f32 %v214, %v208
        %v216 = vadd.f32 %v215, %v209
        %v217 = vadd.f32 %v216, %v210
        %v218 = vadd.f32 %v217, %v211
        %v219 = vrot.slane %v218, 4
        %v220 = vadd.f32 %v218, %v219
        %v221 = vrot.slane %v220, 2
        %v222 = vadd.f32 %v220, %v221
        %v223 = vrot.slane %v222, 1
        %v224 = vadd.f32 %v222, %v223
        %v225 = vlaneseq
        %v226 = vand.u32 %v225, 127
        %vm227 = vcmp.eq.s32.totalorder %v226, 0
        %228 = vrot.lane.b32.xlu0 %v224, 1
        %v229 = vpop.permute.xlu0 %228
        %v230 = vsel %vm227, 0.0, %v229
        %vm231 = vcmp.eq.s32.totalorder %v226, 127
        %232 = vrot.lane.b32.xlu0 %v224, 127
        %v233 = vpop.permute.xlu0 %232
        %v234 = vsel %vm231, 0.0, %v233
        %s235 = sld [smem:[#allocation3]]
        %v236 = vstv %s235
        %v237 = vmul.f32 %v236, %v230
        %s238 = sld [smem:[#allocation3 + $0x1]]
        %v239 = vstv %s238
        %v240 = vmul.f32 %v239, %v224
        %v241 = vadd.f32 %v237, %v240
        %s242 = sld [smem:[#allocation3 + $0x2]]
        %v243 = vstv %s242
        %v244 = vmul.f32 %v243, %v234
        %v245 = vadd.f32 %v241, %v244
        %s246 = sld [smem:[#allocation2]]
        %v247 = vstv %s246
        %v248 = vadd.f32 %v245, %v247
        %v249 = vxor.u32 %v248, 2147483648
        %v250 = vmul.f32 %v249, 1.442695
        %v251 = vpow.pop %v250
        %v252 = vadd.f32 %v251, 1.0
        %v253 = vrcp.pop %v252
        %v254 = vmul.f32 1.0, %v253
        %v255 = vlaneseq
        %v256 = vshrl.u32 %v255, 7
        %v257 = vsub.s32 0, %v256
        %v258 = vrot.slane %v254, %v257
        %v259 = vmul.f32 %v204, %v258
        %v260 = vmul.f32 %v205, %v258
        %v261 = vmul.f32 %v206, %v258
        %v262 = vmul.f32 %v207, %v258
        %v263 = vmul.f32 %v208, %v258
        %v264 = vmul.f32 %v209, %v258
        %v265 = vmul.f32 %v210, %v258
        %v266 = vmul.f32 %v211, %v258
        %267 = vst [vmem:[%s203] sm:$0xff] %v259
        %268 = vst [vmem:[%s203 + $0x8] sm:$0xff] %v260
        %269 = vst [vmem:[%s203 + $0x10] sm:$0xff] %v261
        %270 = vst [vmem:[%s203 + $0x18] sm:$0xff] %v262
        %271 = vst [vmem:[%s203 + $0x20] sm:$0xff] %v263
        %272 = vst [vmem:[%s203 + $0x28] sm:$0xff] %v264
        %273 = vst [vmem:[%s203 + $0x30] sm:$0xff] %v265
        %274 = vst [vmem:[%s203 + $0x38] sm:$0xff] %v266
        %s275 = sand.u32 %s98, 1
        %s276 = scalar_lea.sflag [#allocation5], %s275
        %s277 = sand.u32 %s98, 1
        %s278 = smul.addr %s277, 64
        %s279 = scalar_lea.vmem [#allocation8], %s278
        // Predicated region
        $region41: #{tpu_custom_call.1} parent=31 // pred_check
          %p280 = pneg %p108
        $region42: #{tpu_custom_call.1} parent=31 // pred_check_branch
          %282 = sbr.rel (%p280) target = $region44
        $region43: #{tpu_custom_call.1} parent=31 // pred_region
          %s284 = ssub.s32 1024, 1024
          %285 = vsyncadd %s276, %s284
          %s286 = smul.addr %s22, 8
          %s287 = smul.addr %s286, 128
          %s288 = scalar_lea.hbm %s3, %s287
          %s289 = sshll.u32 %s279, 4
          %s290 = int_to_ptr.vmem [resolvable:$true] %s289
          %295 = dma.vmem_to_hbm [thread:$0]  %s290, 1024, %s288, %s276, 128, 128, 8
        $region44: #{tpu_custom_call.1} parent=31 // pred_fallthru
          _
      $region32: #{tpu_custom_call.1} parent=5 // pred_fallthru
        _
      %p296 = scmp.le.s32.totalorder 2, %s17
      // Predicated region
      $region45: #{tpu_custom_call.1} parent=5 // pred_check
        %p297 = pneg %p296
      $region46: #{tpu_custom_call.1} parent=5 // pred_check_branch
        %299 = sbr.rel (%p297) target = $region48
      $region47: #{tpu_custom_call.1} parent=5 // pred_region
        %s300 = ssub.s32 %s17, 2
        // Predicated region
        $region49: #{tpu_custom_call.1} parent=47 // pred_check
          %p301 = pneg %p114
        $region50: #{tpu_custom_call.1} parent=47 // pred_check_branch
          %303 = sbr.rel (%p301) target = $region52
        $region51: #{tpu_custom_call.1} parent=47 // pred_region
          %s304 = sand.u32 %s99, 1
          %s305 = scalar_lea.sflag [#allocation5], %s304
          %s306 = sand.u32 %s99, 1
          %s307 = smul.addr %s306, 64
          %s308 = scalar_lea.vmem [#allocation8], %s307
          %309 = dma.done %s305, 1024
        $region52: #{tpu_custom_call.1} parent=47 // pred_fallthru
          _
      $region48: #{tpu_custom_call.1} parent=5 // pred_fallthru
        _
    $region6: #{tpu_custom_call.1} parent=1 // loop_footer
      %s21 = sadd.s32 1, %s17
    $region7: #{tpu_custom_call.1} parent=1 // loop_footer_branch
      %16 = sbr.rel target = $region3
    $region8: #{tpu_custom_call.1} parent=1 // loop_exit
      _
    %310 = vsyncpa [#allocation4], 1
    %s311 = scalar_lea.sflag [#allocation4], 1
    %312 = vsyncpa %s311, 1
    %313 = vsyncpa [#allocation5], 1
    %s314 = scalar_lea.sflag [#allocation5], 1
    %315 = vsyncpa %s314, 1
    %316 = vsyncpa [#allocation6], 1
    %s317 = scalar_lea.sflag [#allocation6], 1
    %318 = vsyncpa %s317, 1

</llo_original>
